<compile_context>
chip_gen: v5e
topology: v5e:2x2
jax: 0.10.0
libtpu: 0.0.40
codegen_flags: <defaults>
</compile_context>

<pallas_src>
import functools

import jax
import jax.numpy as jnp
from jax.experimental import pallas as pl
from jax.experimental.pallas import tpu as pltpu


_LANE = 128                        # lane tiling of the last dim
_SUBLANE = 8                       # sublane tiling of the second-to-last dim
_MAX_TILE_ROWS = 512               # upper bound on output rows per grid step
_SUB_ROWS = 64                     # rows per inner accumulation chunk (vreg bound)
_VMEM_BUDGET = 24 * 1024 * 1024    # working-set budget; safe even on v7x (64 MiB VMEM)
_VMEM_LIMIT = 40 * 1024 * 1024     # explicit scoped-VMEM request (> 16/32 MiB defaults)


def _round_up(x, m):
    return (x + m - 1) // m * m


def _accumulate_tile(load_rows, w_ref, b_ref, o_ref, *, KH, KW, TH):
    """Compute one (TH, W_pad) output tile given a row-window loader.

    load_rows(off) must return input rows [tile_start + off, tile_start + off + sub)
    as a (sub, W_pad) f32 array.
    """
    W_pad = o_ref.shape[-1]
    sub = min(TH, _SUB_ROWS)
    for s in range(TH // sub):                       # static -> fully unrolled
        acc = jnp.full((sub, W_pad), b_ref[0], dtype=jnp.float32)  # bias folded into init
        for di in range(KH):
            rows = load_rows(s * sub + di)
            acc = acc + rows * w_ref[di * KW]        # dj == 0 tap: reuse the load
            for dj in range(1, KW):
                # Left-rotate by dj on the XLU; wrapped lanes land in columns
                # >= W_pad - dj >= OW, i.e. only in the discarded lane padding.
                shifted = pltpu.roll(rows, shift=W_pad - dj, axis=1)
                acc = acc + shifted * w_ref[di * KW + dj]
        o_ref[s * sub:(s + 1) * sub, :] = acc        # lane-dense, unmasked stores


def _corr2d_resident_kernel(x_ref, w_ref, b_ref, o_ref, *, KH, KW, TH):
    """Whole padded input resident in VMEM (single DMA, revisited across tiles)."""
    sub = min(TH, _SUB_ROWS)
    row0 = pl.multiple_of(pl.program_id(0) * TH, _SUBLANE)

    def load_rows(off):
        return x_ref[pl.ds(row0 + off, sub), :]

    _accumulate_tile(load_rows, w_ref, b_ref, o_ref, KH=KH, KW=KW, TH=TH)


def _corr2d_stream_kernel(x_hbm, w_ref, b_ref, o_ref, buf, sem,
                          *, KH, KW, TH, halo):
    """Large-input path: manual double-buffered DMA of halo'd row windows."""
    i = pl.program_id(0)
    n = pl.num_programs(0)
    rows = TH + halo                                  # fetched rows per tile
    sub = min(TH, _SUB_ROWS)

    def fetch(step, slot):
        start = pl.multiple_of(step * TH, _SUBLANE)
        src = x_hbm.at[pl.ds(start, rows), :]
        pltpu.make_async_copy(src, buf.at[slot], sem.at[slot]).start()

    @pl.when(i == 0)
    def _():
        fetch(0, 0)                                   # prime slot 0

    slot = i % 2
    # Wait for this tile's window (shape-matching descriptor on the same sem).
    pltpu.make_async_copy(x_hbm.at[pl.ds(0, rows), :], buf.at[slot],
                          sem.at[slot]).wait()

    @pl.when(i + 1 < n)
    def _():
        fetch(i + 1, 1 - slot)                        # prefetch next tile

    slot_view = buf.at[slot]

    def load_rows(off):
        return slot_view[pl.ds(off, sub), :]

    _accumulate_tile(load_rows, w_ref, b_ref, o_ref, KH=KH, KW=KW, TH=TH)


def _pick_tile_rows(OH, W_pad, halo):
    """Largest power-of-two row tile (>= 8) whose double-buffered tiles fit."""
    th = _SUBLANE
    while th * 2 < OH and th < _MAX_TILE_ROWS:
        nxt = th * 2
        # double-buffered input window (+halo) and output tiles, f32
        if 2 * ((nxt + halo) + nxt) * W_pad * 4 > _VMEM_BUDGET:
            break
        th = nxt
    return th


def conv2d_forward(x, weight, bias):
    """Equivalent of Conv2D.forward: corr2d(x, weight) + bias."""
    x = jnp.asarray(x, jnp.float32)
    weight = jnp.asarray(weight, jnp.float32)
    bias = jnp.asarray(bias, jnp.float32).reshape(-1)

    H, W = x.shape
    KH, KW = weight.shape
    OH, OW = H - KH + 1, W - KW + 1

    W_pad = _round_up(W, _LANE)
    halo = _round_up(KH - 1, _SUBLANE) if KH > 1 else 0
    TH = _pick_tile_rows(OH, W_pad, halo)
    num_tiles = pl.cdiv(OH, TH)
    OH_pad = num_tiles * TH
    H_pad = OH_pad + halo                 # last tile's halo'd window stays in bounds

    x_pad = jnp.zeros((H_pad, W_pad), jnp.float32).at[:H, :W].set(x)
    w_flat = weight.reshape(-1)

    out_shape = jax.ShapeDtypeStruct((OH_pad, W_pad), jnp.float32)
    smem = pl.BlockSpec(memory_space=pltpu.MemorySpace.SMEM)
    out_spec = pl.BlockSpec((TH, W_pad), lambda i: (i, 0))

    # Resident path working set: input (conservatively counted double-buffered)
    # plus the double-buffered output tiles.
    resident_bytes = (2 * H_pad * W_pad + 2 * 2 * TH * W_pad) * 4
    use_resident = resident_bytes <= _VMEM_BUDGET

    if use_resident:
        kernel = functools.partial(_corr2d_resident_kernel, KH=KH, KW=KW, TH=TH)
        y_pad = pl.pallas_call(
            kernel,
            grid=(num_tiles,),
            in_specs=[pl.BlockSpec((H_pad, W_pad), lambda i: (0, 0)), smem, smem],
            out_specs=out_spec,
            out_shape=out_shape,
            compiler_params=pltpu.CompilerParams(
                dimension_semantics=("parallel",),     # both TCs on v7x
                vmem_limit_bytes=_VMEM_LIMIT,
            ),
        )(x_pad, w_flat, bias)
    else:
        kernel = functools.partial(_corr2d_stream_kernel,
                                   KH=KH, KW=KW, TH=TH, halo=halo)
        y_pad = pl.pallas_call(
            kernel,
            grid=(num_tiles,),
            in_specs=[pl.BlockSpec(memory_space=pl.ANY), smem, smem],
            out_specs=out_spec,
            out_shape=out_shape,
            scratch_shapes=[
                pltpu.VMEM((2, TH + halo, W_pad), jnp.float32),
                pltpu.SemaphoreType.DMA((2,)),
            ],
            compiler_params=pltpu.CompilerParams(
                dimension_semantics=("arbitrary",),    # manual prefetch is sequential
                vmem_limit_bytes=_VMEM_LIMIT,
            ),
        )(x_pad, w_flat, bias)

    return y_pad[:OH, :OW]


def _corr2d_ref(x, k, b):
    """Pure-JAX reference (same shifted-window formulation) for verification."""
    KH, KW = k.shape
    OH, OW = x.shape[0] - KH + 1, x.shape[1] - KW + 1
    acc = jnp.zeros((OH, OW), jnp.float32)
    for di in range(KH):
        for dj in range(KW):
            acc = acc + x[di:di + OH, dj:dj + OW] * k[di, dj]
    return acc + b


if __name__ == "__main__":
    key = jax.random.PRNGKey(0)
    kx, kw, kb = jax.random.split(key, 3)

    # Shapes consistent with the module's forward: 2-D input, 2-D kernel, scalar bias.
    H, W = 16, 16
    KH, KW = 3, 3

    x = jax.random.normal(kx, (H, W), dtype=jnp.float32)
    weight = jax.random.normal(kw, (KH, KW), dtype=jnp.float32)   # torch.randn(kernel_size)
    bias = jax.random.normal(kb, (1,), dtype=jnp.float32)         # torch.randn(1)

    y = jax.block_until_ready(conv2d_forward(x, weight, bias))
    y_ref = _corr2d_ref(x, weight, bias[0])
    assert y.shape == (H - KH + 1, W - KW + 1), y.shape
    assert jnp.allclose(y, y_ref, atol=1e-5, rtol=1e-5), float(jnp.max(jnp.abs(y - y_ref)))

    # Classic d2l edge-detection shape (exercises KH=1, rectangular input).
    x2 = jnp.ones((6, 8), jnp.float32).at[:, 2:6].set(0.0)
    w2 = jnp.array([[1.0, -1.0]], jnp.float32)
    b2 = jnp.array([0.5], jnp.float32)
    y2 = jax.block_until_ready(conv2d_forward(x2, w2, b2))
    assert jnp.allclose(y2, _corr2d_ref(x2, w2, b2[0]), atol=1e-5, rtol=1e-5)

    # Odd sizes / multi-tile row grid (exercises padding + cdiv path).
    kx3, kw3 = jax.random.split(kx)
    x3 = jax.random.normal(kx3, (13, 10), dtype=jnp.float32)
    w3 = jax.random.normal(kw3, (2, 2), dtype=jnp.float32)
    y3 = jax.block_until_ready(conv2d_forward(x3, w3, bias))
    assert jnp.allclose(y3, _corr2d_ref(x3, w3, bias[0]), atol=1e-5, rtol=1e-5)

    print("KERNEL_OK")
</pallas_src>

<mosaic_0001>
module attributes {stable_mosaic.version = 11 : i64} {
  func.func @_corr2d_resident_kernel(%arg0: i32, %arg1: memref<24x128xf32, #tpu.memory_space<vmem>>, %arg2: memref<9xf32, #tpu.memory_space<smem>>, %arg3: memref<1xf32, #tpu.memory_space<smem>>, %arg4: memref<8x128xf32, #tpu.memory_space<vmem>>) attributes {dimension_semantics = [#tpu.dimension_semantics<parallel>], iteration_bounds = array<i64: 2>, scalar_prefetch = 0 : i64, scratch_operands = 0 : i64, tpu.core_type = #tpu.core_type<tc>, window_params = [{pipeline_mode = #tpu.pipeline_mode<synchronous>, transform_indices = @transform_0, window_bounds = array<i64: 24, 128>}, {transform_indices = @transform_1, window_bounds = array<i64: 9>}, {transform_indices = @transform_2, window_bounds = array<i64: 1>}, {transform_indices = @transform_3, window_bounds = array<i64: 8, 128>}]} {
    %c8_i32 = arith.constant 8 : i32
    %0 = arith.muli %arg0, %c8_i32 : i32
    %1 = tpu.assume_multiple %0, 8 : i32
    %c0 = arith.constant 0 : index
    %2 = memref.load %arg3[%c0] : memref<1xf32, #tpu.memory_space<smem>>
    %3 = vector.broadcast %2 : f32 to vector<8x128xf32>
    %c0_i32 = arith.constant 0 : i32
    %4 = arith.addi %1, %c0_i32 : i32
    %5 = arith.index_cast %4 : i32 to index
    %c0_0 = arith.constant 0 : index
    %6 = vector.load %arg1[%5, %c0_0] : memref<24x128xf32, #tpu.memory_space<vmem>>, vector<8x128xf32>
    %c0_1 = arith.constant 0 : index
    %7 = memref.load %arg2[%c0_1] : memref<9xf32, #tpu.memory_space<smem>>
    %8 = vector.broadcast %7 : f32 to vector<8x128xf32>
    %9 = arith.mulf %6, %8 : vector<8x128xf32>
    %10 = arith.addf %3, %9 : vector<8x128xf32>
    %c127_i32 = arith.constant 127 : i32
    %11 = tpu.dynamic_rotate %6 by %c127_i32 dim 1 : vector<8x128xf32>, i32 -> vector<8x128xf32>
    %c1 = arith.constant 1 : index
    %12 = memref.load %arg2[%c1] : memref<9xf32, #tpu.memory_space<smem>>
    %13 = vector.broadcast %12 : f32 to vector<8x128xf32>
    %14 = arith.mulf %11, %13 : vector<8x128xf32>
    %15 = arith.addf %10, %14 : vector<8x128xf32>
    %c126_i32 = arith.constant 126 : i32
    %16 = tpu.dynamic_rotate %6 by %c126_i32 dim 1 : vector<8x128xf32>, i32 -> vector<8x128xf32>
    %c2 = arith.constant 2 : index
    %17 = memref.load %arg2[%c2] : memref<9xf32, #tpu.memory_space<smem>>
    %18 = vector.broadcast %17 : f32 to vector<8x128xf32>
    %19 = arith.mulf %16, %18 : vector<8x128xf32>
    %20 = arith.addf %15, %19 : vector<8x128xf32>
    %c1_i32 = arith.constant 1 : i32
    %21 = arith.addi %1, %c1_i32 : i32
    %22 = arith.index_cast %21 : i32 to index
    %c0_2 = arith.constant 0 : index
    %23 = vector.load %arg1[%22, %c0_2] : memref<24x128xf32, #tpu.memory_space<vmem>>, vector<8x128xf32>
    %c3 = arith.constant 3 : index
    %24 = memref.load %arg2[%c3] : memref<9xf32, #tpu.memory_space<smem>>
    %25 = vector.broadcast %24 : f32 to vector<8x128xf32>
    %26 = arith.mulf %23, %25 : vector<8x128xf32>
    %27 = arith.addf %20, %26 : vector<8x128xf32>
    %c127_i32_3 = arith.constant 127 : i32
    %28 = tpu.dynamic_rotate %23 by %c127_i32_3 dim 1 : vector<8x128xf32>, i32 -> vector<8x128xf32>
    %c4 = arith.constant 4 : index
    %29 = memref.load %arg2[%c4] : memref<9xf32, #tpu.memory_space<smem>>
    %30 = vector.broadcast %29 : f32 to vector<8x128xf32>
    %31 = arith.mulf %28, %30 : vector<8x128xf32>
    %32 = arith.addf %27, %31 : vector<8x128xf32>
    %c126_i32_4 = arith.constant 126 : i32
    %33 = tpu.dynamic_rotate %23 by %c126_i32_4 dim 1 : vector<8x128xf32>, i32 -> vector<8x128xf32>
    %c5 = arith.constant 5 : index
    %34 = memref.load %arg2[%c5] : memref<9xf32, #tpu.memory_space<smem>>
    %35 = vector.broadcast %34 : f32 to vector<8x128xf32>
    %36 = arith.mulf %33, %35 : vector<8x128xf32>
    %37 = arith.addf %32, %36 : vector<8x128xf32>
    %c2_i32 = arith.constant 2 : i32
    %38 = arith.addi %1, %c2_i32 : i32
    %39 = arith.index_cast %38 : i32 to index
    %c0_5 = arith.constant 0 : index
    %40 = vector.load %arg1[%39, %c0_5] : memref<24x128xf32, #tpu.memory_space<vmem>>, vector<8x128xf32>
    %c6 = arith.constant 6 : index
    %41 = memref.load %arg2[%c6] : memref<9xf32, #tpu.memory_space<smem>>
    %42 = vector.broadcast %41 : f32 to vector<8x128xf32>
    %43 = arith.mulf %40, %42 : vector<8x128xf32>
    %44 = arith.addf %37, %43 : vector<8x128xf32>
    %c127_i32_6 = arith.constant 127 : i32
    %45 = tpu.dynamic_rotate %40 by %c127_i32_6 dim 1 : vector<8x128xf32>, i32 -> vector<8x128xf32>
    %c7 = arith.constant 7 : index
    %46 = memref.load %arg2[%c7] : memref<9xf32, #tpu.memory_space<smem>>
    %47 = vector.broadcast %46 : f32 to vector<8x128xf32>
    %48 = arith.mulf %45, %47 : vector<8x128xf32>
    %49 = arith.addf %44, %48 : vector<8x128xf32>
    %c126_i32_7 = arith.constant 126 : i32
    %50 = tpu.dynamic_rotate %40 by %c126_i32_7 dim 1 : vector<8x128xf32>, i32 -> vector<8x128xf32>
    %c8 = arith.constant 8 : index
    %51 = memref.load %arg2[%c8] : memref<9xf32, #tpu.memory_space<smem>>
    %52 = vector.broadcast %51 : f32 to vector<8x128xf32>
    %53 = arith.mulf %50, %52 : vector<8x128xf32>
    %54 = arith.addf %49, %53 : vector<8x128xf32>
    %c0_8 = arith.constant 0 : index
    %c0_9 = arith.constant 0 : index
    %55 = vector.load %arg4[%c0_8, %c0_9] : memref<8x128xf32, #tpu.memory_space<vmem>>, vector<8x128xf32>
    tpu.vector_store %arg4[%c0_8, %c0_9], %54 {strides = array<i32>} : memref<8x128xf32, #tpu.memory_space<vmem>>, vector<8x128xf32>,
    return
  }
  func.func @transform_0(%arg0: i32) -> (i32, i32) {
    %c0_i32 = arith.constant 0 : i32
    %c0_i32_0 = arith.constant 0 : i32
    %c0_i32_1 = arith.constant 0 : i32
    return %c0_i32, %c0_i32_0 : i32, i32
  }
  func.func @transform_1(%arg0: i32) -> i32 {
    %c0_i32 = arith.constant 0 : i32
    %c0_i32_0 = arith.constant 0 : i32
    return %c0_i32 : i32
  }
  func.func @transform_2(%arg0: i32) -> i32 {
    %c0_i32 = arith.constant 0 : i32
    %c0_i32_0 = arith.constant 0 : i32
    return %c0_i32 : i32
  }
  func.func @transform_3(%arg0: i32) -> (i32, i32) {
    %c0_i32 = arith.constant 0 : i32
    %c0_i32_0 = arith.constant 0 : i32
    return %arg0, %c0_i32 : i32, i32
  }
}

</mosaic_0001>

<llo_original>
// kernel: tpu_custom_call.1
$region0: #{tpu_custom_call.1}
  #allocation0 [shape = 'u32[]', space=smem, size = 0x4, offset = 0x4, fixed_abs, tag = 'smem constant byte address 0x4 - core index']
  #allocation1 [shape = 'u32[72,128]{1,0:T(1,128)}', space=vmem, size = 0x9000, scoped, tag = 'internal scratch']
  #allocation2 [shape = 'f32[1]{0:T(128)S(6)}', space=smem, size = 0x200, scoped, tag = 'scoped memory for tpu_custom_call.1']
  %s0 = inlined_call_operand.hbm [shape: f32[24,128], index: 0, kind: input, shape index: {}]
  %s1 = inlined_call_operand.vmem [shape: f32[9], index: 1, kind: input, shape index: {}]
  %s2 = inlined_call_operand.<no memory space> [shape: f32[1], index: 2, kind: input, shape index: {}]
  %s3 = inlined_call_operand.hbm [shape: f32[16,128], index: 3, kind: output, shape index: {}]
  %s4 = sld [smem:[#allocation0]]
  $region53: #{tpu_custom_call.1} parent=0
    _
  %s6 = ssub.s32 1, %s4
  %s7 = scalar_select 0, %s6, %s4
  %8 = sst [smem:[#allocation2]] %s2
  $region1: #{tpu_custom_call.1} parent=0
    #allocation3 [shape = 'u8[12288]{0}', space=vmem, size = 0x3000, scoped, tag = 'input window, operand 0, single buffered']
    #allocation4 [shape = 's32[2]{0}', space=sflag, size = 0x8, scoped, tag = 'scoped memory for tpu_custom_call.1']
    #allocation5 [shape = 's32[2]{0}', space=sflag, size = 0x8, scoped, tag = 'scoped memory for tpu_custom_call.1']
    #allocation6 [shape = 's32[2]{0}', space=sflag, size = 0x8, scoped, tag = 'scoped memory for tpu_custom_call.1']
    #allocation7 [shape = 'u8[512]{0}', space=smem, size = 0x200, scoped, tag = 'input window, operand 1, single buffered']
    #allocation8 [shape = 'u8[8192]{0}', space=vmem, size = 0x2000, scoped, tag = 'output window, operand 0']
    %9 = vsyncpa [#allocation4], 0
    %10 = vsyncpa [#allocation6], 0
    %11 = vsyncpa [#allocation5], 0
    %s12 = scalar_lea.sflag [#allocation5], 1
    %13 = vsyncpa %s12, 0
    loop: start=0, step=1, limit=4
    $region2: #{tpu_custom_call.1} parent=1 // loop_pre_header
      _
    $region3: #{tpu_custom_call.1} parent=1 // loop_header
      %s15 = sphi 0, %s19
      %p16 = scmp.ge.s32.totalorder %s15, 4
      %s23 = sphi 0, %s23
      %s25 = sphi 0, %s23
      %s26 = sphi 0, %s25
      %s40 = sphi 0, %s26
      %s44 = sphi 0, %s44
      %s46 = sphi 0, %s44
      %s47 = sphi 0, %s46
      %s61 = sphi 0, %s47
      %s65 = sphi 0, %s65
      %s67 = sphi 0, %s65
      %s68 = sphi 0, %s67
      %s82 = sphi 0, %s68
      %s88 = sphi 0, %s90
      %s91 = sphi 0, %s88
      %s92 = sphi 0, %s91
      %s108 = sphi 0, %s92
    $region4: #{tpu_custom_call.1} parent=1 // loop_header_branch
      %18 = sbr.rel (%p16) target = $region8
    $region5: #{tpu_custom_call.1} parent=1 // loop_body
      %s20 = ssub.s32 %s15, 1
      %s21 = ssub.s32 %s15, 2
      %s22 = sadd.s32 %s15, 1
      %s24 = sadd.s32 %s23, 1
      %p27 = scmp.eq.s32.totalorder %s15, 1
      %p28 = scmp.ne.s32.totalorder %s23, %s25
      %p29 = scmp.eq.s32.totalorder %s15, 0
      %p30 = por %p28, %p29
      %p31 = scmp.ne.s32.totalorder %s23, %s25
      %p32 = scmp.eq.s32.totalorder %s20, 1
      %p33 = por %p31, %p32
      %p34 = scmp.ne.s32.totalorder %s25, %s26
      %p35 = scmp.eq.s32.totalorder %s20, 0
      %p36 = por %p34, %p35
      %p37 = scmp.ne.s32.totalorder %s25, %s26
      %p38 = scmp.eq.s32.totalorder %s21, 1
      %p39 = por %p37, %p38
      %p41 = scmp.ne.s32.totalorder %s26, %s40
      %p42 = scmp.eq.s32.totalorder %s21, 0
      %p43 = por %p41, %p42
      %s45 = sadd.s32 %s44, 1
      %p48 = scmp.eq.s32.totalorder %s15, 1
      %p49 = scmp.ne.s32.totalorder %s44, %s46
      %p50 = scmp.eq.s32.totalorder %s15, 0
      %p51 = por %p49, %p50
      %p52 = scmp.ne.s32.totalorder %s44, %s46
      %p53 = scmp.eq.s32.totalorder %s20, 1
      %p54 = por %p52, %p53
      %p55 = scmp.ne.s32.totalorder %s46, %s47
      %p56 = scmp.eq.s32.totalorder %s20, 0
      %p57 = por %p55, %p56
      %p58 = scmp.ne.s32.totalorder %s46, %s47
      %p59 = scmp.eq.s32.totalorder %s21, 1
      %p60 = por %p58, %p59
      %p62 = scmp.ne.s32.totalorder %s47, %s61
      %p63 = scmp.eq.s32.totalorder %s21, 0
      %p64 = por %p62, %p63
      %s66 = sadd.s32 %s65, 1
      %p69 = scmp.eq.s32.totalorder %s15, 1
      %p70 = scmp.ne.s32.totalorder %s65, %s67
      %p71 = scmp.eq.s32.totalorder %s15, 0
      %p72 = por %p70, %p71
      %p73 = scmp.ne.s32.totalorder %s65, %s67
      %p74 = scmp.eq.s32.totalorder %s20, 1
      %p75 = por %p73, %p74
      %p76 = scmp.ne.s32.totalorder %s67, %s68
      %p77 = scmp.eq.s32.totalorder %s20, 0
      %p78 = por %p76, %p77
      %p79 = scmp.ne.s32.totalorder %s67, %s68
      %p80 = scmp.eq.s32.totalorder %s21, 1
      %p81 = por %p79, %p80
      %p83 = scmp.ne.s32.totalorder %s68, %s82
      %p84 = scmp.eq.s32.totalorder %s21, 0
      %p85 = por %p83, %p84
      %s86 = ssub.s32 %s15, %s22
      %p87 = scmp.eq.s32.totalorder %s86, 0
      %s89 = sadd.s32 %s88, 1
      %s90 = scalar_select %p87, %s88, %s89
      %p93 = pneg %p87
      %p94 = scmp.eq.s32.totalorder %s15, 1
      %p95 = por %p93, %p94
      %p96 = scmp.ne.s32.totalorder %s88, %s91
      %p97 = scmp.eq.s32.totalorder %s15, 0
      %p98 = por %p96, %p97
      %p99 = scmp.ne.s32.totalorder %s88, %s91
      %p100 = scmp.eq.s32.totalorder %s20, 1
      %p101 = por %p99, %p100
      %p102 = scmp.ne.s32.totalorder %s91, %s92
      %p103 = scmp.eq.s32.totalorder %s20, 0
      %p104 = por %p102, %p103
      %p105 = scmp.ne.s32.totalorder %s91, %s92
      %p106 = scmp.eq.s32.totalorder %s21, 1
      %p107 = por %p105, %p106
      %p109 = scmp.ne.s32.totalorder %s92, %s108
      %p110 = scmp.eq.s32.totalorder %s21, 0
      %p111 = por %p109, %p110
      %p112 = scmp.le.s32.totalorder 1, %s15
      %p113 = scmp.lt.s32.totalorder %s15, 3
      %p114 = pnand %p112, %p113
      %p115 = pneg %p114
      // Predicated region
      $region9: #{tpu_custom_call.1} parent=5 // pred_check
        _
      $region10: #{tpu_custom_call.1} parent=5 // pred_check_branch
        %117 = sbr.rel (%p114) target = $region12
      $region11: #{tpu_custom_call.1} parent=5 // pred_region
        %s118 = ssub.s32 %s15, 1
        // Predicated region
        $region13: #{tpu_custom_call.1} parent=11 // pred_check
          %p119 = pneg %p36
        $region14: #{tpu_custom_call.1} parent=11 // pred_check_branch
          %121 = sbr.rel (%p119) target = $region16
        $region15: #{tpu_custom_call.1} parent=11 // pred_region
          %123 = vsyncadd [#allocation4], 0
          %s124 = sshll.u32 %s0, 4
          %s125 = int_to_ptr.hbm [resolvable:$true] %s124
          %s126 = sshll.u32 [#allocation3], 4
          %s127 = int_to_ptr.vmem [resolvable:$true] %s126
          %132 = dma.hbm_to_vmem [thread:$0]  %s125, 384, %s127, [#allocation4], 128, 128, 8
        $region16: #{tpu_custom_call.1} parent=11 // pred_fallthru
          _
        // Predicated region
        $region17: #{tpu_custom_call.1} parent=11 // pred_check
          %p133 = pneg %p57
        $region18: #{tpu_custom_call.1} parent=11 // pred_check_branch
          %135 = sbr.rel (%p133) target = $region20
        $region19: #{tpu_custom_call.1} parent=11 // pred_region
          %137 = vsyncadd [#allocation6], 0
          %s139 = sshll.u32 %s1, 4
          %s140 = int_to_ptr.vmem [resolvable:$true] %s139
          %142 = dma.vmem_to_smem %s140, 16, [#allocation7], [#allocation6]
        $region20: #{tpu_custom_call.1} parent=11 // pred_fallthru
          _
        // Predicated region
        $region21: #{tpu_custom_call.1} parent=11 // pred_check
          %p143 = pneg %p78
        $region22: #{tpu_custom_call.1} parent=11 // pred_check_branch
          %145 = sbr.rel (%p143) target = $region24
        $region23: #{tpu_custom_call.1} parent=11 // pred_region
          _
        $region24: #{tpu_custom_call.1} parent=11 // pred_fallthru
          _
      $region12: #{tpu_custom_call.1} parent=5 // pred_fallthru
        _
      %p146 = scmp.lt.s32.totalorder %s15, 2
      // Predicated region
      $region25: #{tpu_custom_call.1} parent=5 // pred_check
        %p147 = pneg %p146
      $region26: #{tpu_custom_call.1} parent=5 // pred_check_branch
        %149 = sbr.rel (%p147) target = $region28
      $region27: #{tpu_custom_call.1} parent=5 // pred_region
        _
      $region28: #{tpu_custom_call.1} parent=5 // pred_fallthru
        _
      %p150 = scmp.le.s32.totalorder 1, %s15
      %p151 = scmp.lt.s32.totalorder %s15, 3
      %p152 = pnand %p150, %p151
      %p153 = pneg %p152
      // Predicated region
      $region29: #{tpu_custom_call.1} parent=5 // pred_check
        _
      $region30: #{tpu_custom_call.1} parent=5 // pred_check_branch
        %155 = sbr.rel (%p152) target = $region32
      $region31: #{tpu_custom_call.1} parent=5 // pred_region
        %s156 = ssub.s32 %s15, 1
        // Predicated region
        $region33: #{tpu_custom_call.1} parent=31 // pred_check
          %p157 = pneg %p36
        $region34: #{tpu_custom_call.1} parent=31 // pred_check_branch
          %159 = sbr.rel (%p157) target = $region36
        $region35: #{tpu_custom_call.1} parent=31 // pred_region
          %161 = dma.done [#allocation4], 384
        $region36: #{tpu_custom_call.1} parent=31 // pred_fallthru
          _
        // Predicated region
        $region37: #{tpu_custom_call.1} parent=31 // pred_check
          %p162 = pneg %p57
        $region38: #{tpu_custom_call.1} parent=31 // pred_check_branch
          %164 = sbr.rel (%p162) target = $region40
        $region39: #{tpu_custom_call.1} parent=31 // pred_region
          %166 = dma.done [#allocation6], 16
        $region40: #{tpu_custom_call.1} parent=31 // pred_fallthru
          _
        %167 = sfence
        %p168 = pneg %p36
        %p169 = pneg %p33
        %p170 = pneg %p57
        %p171 = pneg %p54
        %p172 = pneg %p78
        %p173 = pneg %p75
        %p174 = pneg %p104
        %p175 = pneg %p101
        %s176 = sand.u32 %s91, 1
        %s177 = scalar_lea.sflag [#allocation5], %s176
        %s178 = sand.u32 %s91, 1
        %s179 = smul.addr %s178, 8
        %s180 = scalar_lea.vmem [#allocation8], %s179
        %s181 = smul.u32 %s20, 8
        %s182 = sld [smem:[#allocation2]]
        %v183 = vstv %s182
        %s184 = scalar_lea.vmem [#allocation3], %s181
        %v185 = vld [vmem:[%s184] sm:$0xff]
        %s186 = sld [smem:[#allocation7]]
        %v187 = vstv %s186
        %v188 = vmul.f32 %v185, %v187
        %v189 = vadd.f32 %v183, %v188
        %190 = vrot.lane.b32.xlu0 %v185, 127
        %v191 = vpop.permute.xlu0 %190
        %s192 = sld [smem:[#allocation7 + $0x1]]
        %v193 = vstv %s192
        %v194 = vmul.f32 %v191, %v193
        %v195 = vadd.f32 %v189, %v194
        %196 = vrot.lane.b32.xlu0 %v185, 126
        %v197 = vpop.permute.xlu0 %196
        %s198 = sld [smem:[#allocation7 + $0x2]]
        %v199 = vstv %s198
        %v200 = vmul.f32 %v197, %v199
        %v201 = vadd.f32 %v195, %v200
        %s202 = sadd.s32 %s181, 1
        %s203 = scalar_lea.vmem [#allocation3], %s202
        %v204 = vld [vmem:[%s203] sm:$0xff]
        %s205 = sld [smem:[#allocation7 + $0x3]]
        %v206 = vstv %s205
        %v207 = vmul.f32 %v204, %v206
        %v208 = vadd.f32 %v201, %v207
        %209 = vrot.lane.b32.xlu0 %v204, 127
        %v210 = vpop.permute.xlu0 %209
        %s211 = sld [smem:[#allocation7 + $0x4]]
        %v212 = vstv %s211
        %v213 = vmul.f32 %v210, %v212
        %v214 = vadd.f32 %v208, %v213
        %215 = vrot.lane.b32.xlu0 %v204, 126
        %v216 = vpop.permute.xlu0 %215
        %s217 = sld [smem:[#allocation7 + $0x5]]
        %v218 = vstv %s217
        %v219 = vmul.f32 %v216, %v218
        %v220 = vadd.f32 %v214, %v219
        %s221 = sadd.s32 %s181, 2
        %s222 = scalar_lea.vmem [#allocation3], %s221
        %v223 = vld [vmem:[%s222] sm:$0xff]
        %s224 = sld [smem:[#allocation7 + $0x6]]
        %v225 = vstv %s224
        %v226 = vmul.f32 %v223, %v225
        %v227 = vadd.f32 %v220, %v226
        %228 = vrot.lane.b32.xlu0 %v223, 127
        %v229 = vpop.permute.xlu0 %228
        %s230 = sld [smem:[#allocation7 + $0x7]]
        %v231 = vstv %s230
        %v232 = vmul.f32 %v229, %v231
        %v233 = vadd.f32 %v227, %v232
        %234 = vrot.lane.b32.xlu0 %v223, 126
        %v235 = vpop.permute.xlu0 %234
        %s236 = sld [smem:[#allocation7 + $0x8]]
        %v237 = vstv %s236
        %v238 = vmul.f32 %v235, %v237
        %v239 = vadd.f32 %v233, %v238
        %240 = vst [vmem:[%s180] sm:$0xff] %v239
        %s241 = sand.u32 %s91, 1
        %s242 = scalar_lea.sflag [#allocation5], %s241
        %s243 = sand.u32 %s91, 1
        %s244 = smul.addr %s243, 8
        %s245 = scalar_lea.vmem [#allocation8], %s244
        // Predicated region
        $region41: #{tpu_custom_call.1} parent=31 // pred_check
          %p246 = pneg %p101
        $region42: #{tpu_custom_call.1} parent=31 // pred_check_branch
          %248 = sbr.rel (%p246) target = $region44
        $region43: #{tpu_custom_call.1} parent=31 // pred_region
          %250 = vsyncadd %s242, 0
          %s251 = smul.addr %s20, 8
          %s252 = scalar_lea.hbm %s3, %s251
          %s254 = sshll.u32 %s245, 4
          %s255 = int_to_ptr.vmem [resolvable:$true] %s254
          %s256 = sshll.u32 %s252, 4
          %s257 = int_to_ptr.hbm [resolvable:$true] %s256
          %259 = dma.vmem_to_hbm [thread:$0]  %s255, 128, %s257, %s242
        $region44: #{tpu_custom_call.1} parent=31 // pred_fallthru
          _
      $region32: #{tpu_custom_call.1} parent=5 // pred_fallthru
        _
      %p260 = scmp.le.s32.totalorder 2, %s15
      // Predicated region
      $region45: #{tpu_custom_call.1} parent=5 // pred_check
        %p261 = pneg %p260
      $region46: #{tpu_custom_call.1} parent=5 // pred_check_branch
        %263 = sbr.rel (%p261) target = $region48
      $region47: #{tpu_custom_call.1} parent=5 // pred_region
        %s264 = ssub.s32 %s15, 2
        // Predicated region
        $region49: #{tpu_custom_call.1} parent=47 // pred_check
          %p265 = pneg %p107
        $region50: #{tpu_custom_call.1} parent=47 // pred_check_branch
          %267 = sbr.rel (%p265) target = $region52
        $region51: #{tpu_custom_call.1} parent=47 // pred_region
          %s268 = sand.u32 %s92, 1
          %s269 = scalar_lea.sflag [#allocation5], %s268
          %s270 = sand.u32 %s92, 1
          %s271 = smul.addr %s270, 8
          %s272 = scalar_lea.vmem [#allocation8], %s271
          %274 = dma.done %s269, 128
        $region52: #{tpu_custom_call.1} parent=47 // pred_fallthru
          _
      $region48: #{tpu_custom_call.1} parent=5 // pred_fallthru
        _
    $region6: #{tpu_custom_call.1} parent=1 // loop_footer
      %s19 = sadd.s32 1, %s15
    $region7: #{tpu_custom_call.1} parent=1 // loop_footer_branch
      %14 = sbr.rel target = $region3
    $region8: #{tpu_custom_call.1} parent=1 // loop_exit
      _
    %275 = vsyncpa [#allocation4], 1
    %s276 = scalar_lea.sflag [#allocation4], 1
    %277 = vsyncpa %s276, 1
    %278 = vsyncpa [#allocation5], 1
    %s279 = scalar_lea.sflag [#allocation5], 1
    %280 = vsyncpa %s279, 1
    %281 = vsyncpa [#allocation6], 1
    %s282 = scalar_lea.sflag [#allocation6], 1
    %283 = vsyncpa %s282, 1

</llo_original>
